<compile_context>
chip_gen: v5e
topology: v5e:2x2
jax: 0.10.0
libtpu: 0.0.40
codegen_flags: <defaults>
</compile_context>

<pallas_src>
import functools

import jax
import jax.numpy as jnp
from jax.experimental import pallas as pl
from jax.experimental.pallas import tpu as pltpu

_OUT_PAD = 128  # lane-dense classifier output width


# -----------------------------------------------------------------------------
# Fused Pallas kernel: conv1 + relu + conv2 + mean-pool + linear
# -----------------------------------------------------------------------------
def _make_fused_gat_kernel(N, H, C):
    HC = H * C

    def gat_layer(xin_bf, mask_bias, w_cat_ref, b_ref, scr, apply_relu):
        # One fused MXU matmul: columns are [ W | att_src-fold | att_dst-fold ].
        cat = jnp.dot(xin_bf, w_cat_ref[...],
                      preferred_element_type=jnp.float32)         # [N, HC+2H] f32
        h_bf = cat[:, :HC].astype(jnp.bfloat16)                   # MXU operand for agg
        a_src = cat[:, HC:HC + H]                                  # [N, H] f32 (logits)
        a_dst = cat[:, HC + H:HC + 2 * H]                          # [N, H] f32
        a_src_t = a_src.T                                          # [H, N] — one transpose/layer
        bias = b_ref[...]                                          # [1, HC] f32

        for hh in range(H):                                        # static unroll (tiny N, H=4)
            e = a_dst[:, hh:hh + 1] + a_src_t[hh:hh + 1, :]        # e[i,j] = a_dst[i] + a_src[j]
            e = jnp.maximum(e, 0.2 * e)                            # leaky_relu(0.2)
            e = e + mask_bias                                      # -1e30 on non-edges
            e = e - jnp.max(e, axis=1, keepdims=True)
            p = jnp.exp(e)                                         # masked entries -> exactly 0
            denom = jnp.maximum(jnp.sum(p, axis=1, keepdims=True), 1e-30)
            alpha = (p * pl.reciprocal(denom, approx=True)).astype(jnp.bfloat16)
            head = jnp.dot(alpha, h_bf[:, hh * C:(hh + 1) * C],
                           preferred_element_type=jnp.float32)     # [N, C] f32
            head = head + bias[:, hh * C:(hh + 1) * C]             # bias folded into head write
            if apply_relu:
                head = jnp.maximum(head, 0.0)
            scr[:, hh * C:(hh + 1) * C] = head
        return scr[...]

    def kernel(x_ref, adj_ref,
               w_cat1_ref, b1_ref,
               w_cat2_ref, b2_ref,
               pool_ref, lin_w_ref, lin_b_ref,
               o_ref, h1_scr, h2_scr):
        x_bf = x_ref[...].astype(jnp.bfloat16)                     # [N, F_in]
        # additive mask: 0 where edge/self-loop, -1e30 elsewhere (built once, f32)
        mask_bias = (adj_ref[...] - 1.0) * 1e30                    # [N, N]

        h1 = gat_layer(x_bf, mask_bias, w_cat1_ref, b1_ref, h1_scr, apply_relu=True)
        h2 = gat_layer(h1.astype(jnp.bfloat16), mask_bias, w_cat2_ref, b2_ref,
                       h2_scr, apply_relu=False)

        # global_mean_pool as pool_mat @ h2, then final Linear (lane-dense, padded).
        pooled = jnp.dot(pool_ref[...], h2.astype(jnp.bfloat16),
                         preferred_element_type=jnp.float32)       # [G, HC]
        o_ref[...] = (jnp.dot(pooled.astype(jnp.bfloat16), lin_w_ref[...],
                              preferred_element_type=jnp.float32)
                      + lin_b_ref[...])

    return kernel


# -----------------------------------------------------------------------------
# Wrapper
# -----------------------------------------------------------------------------
def _fold_att(w, att, H, C):
    """wa[f, h] = sum_c W[f, h*C + c] * att[h, c]  (fold attention vector into W)."""
    return jnp.einsum("fhc,hc->fh", w.reshape(w.shape[0], H, C), att)


@functools.partial(jax.jit, static_argnames=("num_graphs",))
def gat_forward(params, x, adj, batch, num_graphs):
    N = x.shape[0]
    H, C = params["att_src1"].shape
    HC = H * C
    num_classes = params["lin_w"].shape[1]

    # --- plain-JAX glue: fold + concat attention into W, build pool matrix, pad classifier ---
    w_cat1 = jnp.concatenate(
        [params["w1"],
         _fold_att(params["w1"], params["att_src1"], H, C),
         _fold_att(params["w1"], params["att_dst1"], H, C)], axis=1).astype(jnp.bfloat16)
    w_cat2 = jnp.concatenate(
        [params["w2"],
         _fold_att(params["w2"], params["att_src2"], H, C),
         _fold_att(params["w2"], params["att_dst2"], H, C)], axis=1).astype(jnp.bfloat16)

    one_hot = (batch[None, :] == jnp.arange(num_graphs)[:, None]).astype(jnp.float32)
    counts = jnp.maximum(jnp.sum(one_hot, axis=1, keepdims=True), 1.0)
    pool_mat = (one_hot / counts).astype(jnp.bfloat16)             # [G, N]

    lin_w_pad = (jnp.zeros((HC, _OUT_PAD), jnp.float32)
                 .at[:, :num_classes].set(params["lin_w"])).astype(jnp.bfloat16)
    lin_b_pad = jnp.zeros((1, _OUT_PAD), jnp.float32).at[:, :num_classes].set(params["lin_b"])

    # TODO(synk): F.dropout(p=0.4) is stochastic; module evaluated in eval mode -> identity.

    kernel = _make_fused_gat_kernel(N, H, C)
    vmem = pl.BlockSpec(memory_space=pltpu.MemorySpace.VMEM)
    out_padded = pl.pallas_call(
        kernel,
        out_shape=jax.ShapeDtypeStruct((num_graphs, _OUT_PAD), jnp.float32),
        in_specs=[vmem] * 9,
        out_specs=vmem,
        scratch_shapes=[pltpu.VMEM((N, HC), jnp.float32),
                        pltpu.VMEM((N, HC), jnp.float32)],
    )(x, adj,
      w_cat1, params["bias1"],
      w_cat2, params["bias2"],
      pool_mat, lin_w_pad, lin_b_pad)

    return out_padded[:, :num_classes]


# -----------------------------------------------------------------------------
# Deterministic parameter init (glorot-uniform, matching the module's shapes)
# -----------------------------------------------------------------------------
def _glorot(key, shape):
    fan_in, fan_out = shape[0], shape[-1]
    bound = (6.0 / (fan_in + fan_out)) ** 0.5
    return jax.random.uniform(key, shape, jnp.float32, -bound, bound)


def init_params(key, num_node_features, hidden_channels, num_classes, num_heads):
    ks = jax.random.split(key, 8)
    H, C = num_heads, hidden_channels
    return {
        # conv1: in = num_node_features, out = hidden_channels per head, concat
        "w1": _glorot(ks[0], (num_node_features, H * C)),
        "att_src1": _glorot(ks[1], (H, C)),
        "att_dst1": _glorot(ks[2], (H, C)),
        "bias1": jnp.zeros((1, H * C), jnp.float32),
        # conv2: in = hidden_channels * heads
        "w2": _glorot(ks[3], (H * C, H * C)),
        "att_src2": _glorot(ks[4], (H, C)),
        "att_dst2": _glorot(ks[5], (H, C)),
        "bias2": jnp.zeros((1, H * C), jnp.float32),
        # final Linear(hidden*heads -> num_classes), stored pre-transposed [in, out]
        "lin_w": _glorot(ks[6], (H * C, num_classes)),
        "lin_b": jax.random.uniform(ks[7], (1, num_classes), jnp.float32, -0.1, 0.1),
    }


# -----------------------------------------------------------------------------
# Main
# -----------------------------------------------------------------------------
if __name__ == "__main__":
    num_node_features = 8
    hidden_channels = 8
    num_classes = 4
    num_heads = 4
    N = 16            # total nodes (2 graphs x 8 nodes)
    num_graphs = 2

    key = jax.random.PRNGKey(0)
    k_x, k_p = jax.random.split(key)

    # Node features
    x = jax.random.normal(k_x, (N, num_node_features), jnp.float32)

    # Two ring graphs of 8 nodes each, undirected (both directions) -> 32 directed edges
    src_list, dst_list = [], []
    for g in range(num_graphs):
        base = g * 8
        for i in range(8):
            a, b = base + i, base + (i + 1) % 8
            src_list += [a, b]
            dst_list += [b, a]
    edge_index = jnp.array([src_list, dst_list], dtype=jnp.int32)   # [2, 32]
    batch = jnp.repeat(jnp.arange(num_graphs, dtype=jnp.int32), 8)  # [16]

    # Dense adjacency mask adj[dst, src] = 1 for each edge, plus self-loops
    adj = jnp.zeros((N, N), jnp.float32)
    adj = adj.at[edge_index[1], edge_index[0]].set(1.0)
    adj = adj.at[jnp.arange(N), jnp.arange(N)].set(1.0)

    params = init_params(k_p, num_node_features, hidden_channels, num_classes, num_heads)

    out = gat_forward(params, x, adj, batch, num_graphs)
    out = jax.block_until_ready(out)
    assert out.shape == (num_graphs, num_classes)
    assert bool(jnp.all(jnp.isfinite(out)))
    print("KERNEL_OK")
</pallas_src>

<mosaic_0001>
module attributes {stable_mosaic.version = 11 : i64} {
  func.func @kernel(%arg0: memref<16x8xf32, #tpu.memory_space<vmem>>, %arg1: memref<16x16xf32, #tpu.memory_space<vmem>>, %arg2: memref<8x40xbf16, #tpu.memory_space<vmem>>, %arg3: memref<1x32xf32, #tpu.memory_space<vmem>>, %arg4: memref<32x40xbf16, #tpu.memory_space<vmem>>, %arg5: memref<1x32xf32, #tpu.memory_space<vmem>>, %arg6: memref<2x16xbf16, #tpu.memory_space<vmem>>, %arg7: memref<32x128xbf16, #tpu.memory_space<vmem>>, %arg8: memref<1x128xf32, #tpu.memory_space<vmem>>, %arg9: memref<2x128xf32, #tpu.memory_space<vmem>>, %arg10: memref<16x32xf32, #tpu.memory_space<vmem>>, %arg11: memref<16x32xf32, #tpu.memory_space<vmem>>) attributes {dimension_semantics = [], scalar_prefetch = 0 : i64, scratch_operands = 2 : i64, tpu.core_type = #tpu.core_type<tc>} {
    %c0 = arith.constant 0 : index
    %c0_0 = arith.constant 0 : index
    %0 = vector.load %arg0[%c0, %c0_0] : memref<16x8xf32, #tpu.memory_space<vmem>>, vector<16x8xf32>
    %1 = arith.truncf %0 : vector<16x8xf32> to vector<16x8xbf16>
    %c0_1 = arith.constant 0 : index
    %c0_2 = arith.constant 0 : index
    %2 = vector.load %arg1[%c0_1, %c0_2] : memref<16x16xf32, #tpu.memory_space<vmem>>, vector<16x16xf32>
    %cst = arith.constant 1.000000e+00 : f32
    %3 = vector.broadcast %cst : f32 to vector<16x16xf32>
    %4 = arith.subf %2, %3 : vector<16x16xf32>
    %cst_3 = arith.constant 1.000000e+30 : f32
    %5 = vector.broadcast %cst_3 : f32 to vector<16x16xf32>
    %6 = arith.mulf %4, %5 : vector<16x16xf32>
    %c0_4 = arith.constant 0 : index
    %c0_5 = arith.constant 0 : index
    %7 = vector.load %arg2[%c0_4, %c0_5] : memref<8x40xbf16, #tpu.memory_space<vmem>>, vector<8x40xbf16>
    %cst_6 = arith.constant dense<0.000000e+00> : vector<16x40xf32>
    %8 = tpu.matmul %1, %7, %cst_6 {dimension_numbers = #tpu.dot_dimension_numbers<[1], [0], [0], [1], [0, 0, 1, 1], [], []>} : vector<16x8xbf16>, vector<8x40xbf16>, vector<16x40xf32> -> vector<16x40xf32>
    %9 = vector.extract_strided_slice %8 {offsets = [0, 0], sizes = [16, 32], strides = [1, 1]} : vector<16x40xf32> to vector<16x32xf32>
    %10 = arith.truncf %9 : vector<16x32xf32> to vector<16x32xbf16>
    %11 = vector.extract_strided_slice %8 {offsets = [0, 32], sizes = [16, 4], strides = [1, 1]} : vector<16x40xf32> to vector<16x4xf32>
    %12 = vector.extract_strided_slice %8 {offsets = [0, 36], sizes = [16, 4], strides = [1, 1]} : vector<16x40xf32> to vector<16x4xf32>
    %13 = tpu.transpose %11, [1, 0] : vector<16x4xf32> -> vector<4x16xf32>
    %c0_7 = arith.constant 0 : index
    %c0_8 = arith.constant 0 : index
    %14 = vector.load %arg3[%c0_7, %c0_8] : memref<1x32xf32, #tpu.memory_space<vmem>>, vector<1x32xf32>
    %15 = vector.extract_strided_slice %12 {offsets = [0, 0], sizes = [16, 1], strides = [1, 1]} : vector<16x4xf32> to vector<16x1xf32>
    %16 = vector.extract_strided_slice %13 {offsets = [0, 0], sizes = [1, 16], strides = [1, 1]} : vector<4x16xf32> to vector<1x16xf32>
    %17 = vector.broadcast %15 : vector<16x1xf32> to vector<16x16xf32>
    %18 = vector.broadcast %16 : vector<1x16xf32> to vector<16x16xf32>
    %19 = arith.addf %17, %18 : vector<16x16xf32>
    %cst_9 = arith.constant 2.000000e-01 : f32
    %20 = vector.broadcast %cst_9 : f32 to vector<16x16xf32>
    %21 = arith.mulf %20, %19 : vector<16x16xf32>
    %22 = arith.maximumf %19, %21 : vector<16x16xf32>
    %23 = arith.addf %22, %6 : vector<16x16xf32>
    %cst_10 = arith.constant dense<0xFF800000> : vector<16xf32>
    %24 = vector.multi_reduction <maximumf>, %23, %cst_10 [1] : vector<16x16xf32> to vector<16xf32>
    %25 = vector.shape_cast %24 : vector<16xf32> to vector<16x1xf32>
    %26 = vector.broadcast %25 : vector<16x1xf32> to vector<16x16xf32>
    %27 = arith.subf %23, %26 : vector<16x16xf32>
    %28 = math.exp %27 : vector<16x16xf32>
    %cst_11 = arith.constant dense<0.000000e+00> : vector<16xf32>
    %29 = vector.multi_reduction <add>, %28, %cst_11 [1] : vector<16x16xf32> to vector<16xf32>
    %30 = vector.shape_cast %29 : vector<16xf32> to vector<16x1xf32>
    %cst_12 = arith.constant 1.000000e-30 : f32
    %31 = vector.broadcast %cst_12 : f32 to vector<16x1xf32>
    %32 = arith.maximumf %30, %31 : vector<16x1xf32>
    %33 = tpu.reciprocal %32 {approx = true} : vector<16x1xf32> -> vector<16x1xf32>
    %34 = vector.broadcast %33 : vector<16x1xf32> to vector<16x16xf32>
    %35 = arith.mulf %28, %34 : vector<16x16xf32>
    %36 = arith.truncf %35 : vector<16x16xf32> to vector<16x16xbf16>
    %37 = vector.extract_strided_slice %10 {offsets = [0, 0], sizes = [16, 8], strides = [1, 1]} : vector<16x32xbf16> to vector<16x8xbf16>
    %cst_13 = arith.constant dense<0.000000e+00> : vector<16x8xf32>
    %38 = tpu.matmul %36, %37, %cst_13 {dimension_numbers = #tpu.dot_dimension_numbers<[1], [0], [0], [1], [0, 0, 1, 1], [], []>} : vector<16x16xbf16>, vector<16x8xbf16>, vector<16x8xf32> -> vector<16x8xf32>
    %39 = vector.extract_strided_slice %14 {offsets = [0, 0], sizes = [1, 8], strides = [1, 1]} : vector<1x32xf32> to vector<1x8xf32>
    %40 = vector.broadcast %39 : vector<1x8xf32> to vector<16x8xf32>
    %41 = arith.addf %38, %40 : vector<16x8xf32>
    %cst_14 = arith.constant 0.000000e+00 : f32
    %42 = vector.broadcast %cst_14 : f32 to vector<16x8xf32>
    %43 = arith.maximumf %41, %42 : vector<16x8xf32>
    %c0_15 = arith.constant 0 : index
    %c0_16 = arith.constant 0 : index
    %44 = vector.load %arg10[%c0_15, %c0_16] : memref<16x32xf32, #tpu.memory_space<vmem>>, vector<16x8xf32>
    tpu.vector_store %arg10[%c0_15, %c0_16], %43 {strides = array<i32>} : memref<16x32xf32, #tpu.memory_space<vmem>>, vector<16x8xf32>,
    %45 = vector.extract_strided_slice %12 {offsets = [0, 1], sizes = [16, 1], strides = [1, 1]} : vector<16x4xf32> to vector<16x1xf32>
    %46 = vector.extract_strided_slice %13 {offsets = [1, 0], sizes = [1, 16], strides = [1, 1]} : vector<4x16xf32> to vector<1x16xf32>
    %47 = vector.broadcast %45 : vector<16x1xf32> to vector<16x16xf32>
    %48 = vector.broadcast %46 : vector<1x16xf32> to vector<16x16xf32>
    %49 = arith.addf %47, %48 : vector<16x16xf32>
    %cst_17 = arith.constant 2.000000e-01 : f32
    %50 = vector.broadcast %cst_17 : f32 to vector<16x16xf32>
    %51 = arith.mulf %50, %49 : vector<16x16xf32>
    %52 = arith.maximumf %49, %51 : vector<16x16xf32>
    %53 = arith.addf %52, %6 : vector<16x16xf32>
    %cst_18 = arith.constant dense<0xFF800000> : vector<16xf32>
    %54 = vector.multi_reduction <maximumf>, %53, %cst_18 [1] : vector<16x16xf32> to vector<16xf32>
    %55 = vector.shape_cast %54 : vector<16xf32> to vector<16x1xf32>
    %56 = vector.broadcast %55 : vector<16x1xf32> to vector<16x16xf32>
    %57 = arith.subf %53, %56 : vector<16x16xf32>
    %58 = math.exp %57 : vector<16x16xf32>
    %cst_19 = arith.constant dense<0.000000e+00> : vector<16xf32>
    %59 = vector.multi_reduction <add>, %58, %cst_19 [1] : vector<16x16xf32> to vector<16xf32>
    %60 = vector.shape_cast %59 : vector<16xf32> to vector<16x1xf32>
    %cst_20 = arith.constant 1.000000e-30 : f32
    %61 = vector.broadcast %cst_20 : f32 to vector<16x1xf32>
    %62 = arith.maximumf %60, %61 : vector<16x1xf32>
    %63 = tpu.reciprocal %62 {approx = true} : vector<16x1xf32> -> vector<16x1xf32>
    %64 = vector.broadcast %63 : vector<16x1xf32> to vector<16x16xf32>
    %65 = arith.mulf %58, %64 : vector<16x16xf32>
    %66 = arith.truncf %65 : vector<16x16xf32> to vector<16x16xbf16>
    %67 = vector.extract_strided_slice %10 {offsets = [0, 8], sizes = [16, 8], strides = [1, 1]} : vector<16x32xbf16> to vector<16x8xbf16>
    %cst_21 = arith.constant dense<0.000000e+00> : vector<16x8xf32>
    %68 = tpu.matmul %66, %67, %cst_21 {dimension_numbers = #tpu.dot_dimension_numbers<[1], [0], [0], [1], [0, 0, 1, 1], [], []>} : vector<16x16xbf16>, vector<16x8xbf16>, vector<16x8xf32> -> vector<16x8xf32>
    %69 = vector.extract_strided_slice %14 {offsets = [0, 8], sizes = [1, 8], strides = [1, 1]} : vector<1x32xf32> to vector<1x8xf32>
    %70 = vector.broadcast %69 : vector<1x8xf32> to vector<16x8xf32>
    %71 = arith.addf %68, %70 : vector<16x8xf32>
    %cst_22 = arith.constant 0.000000e+00 : f32
    %72 = vector.broadcast %cst_22 : f32 to vector<16x8xf32>
    %73 = arith.maximumf %71, %72 : vector<16x8xf32>
    %c0_23 = arith.constant 0 : index
    %c8 = arith.constant 8 : index
    %74 = vector.load %arg10[%c0_23, %c8] : memref<16x32xf32, #tpu.memory_space<vmem>>, vector<16x8xf32>
    tpu.vector_store %arg10[%c0_23, %c8], %73 {strides = array<i32>} : memref<16x32xf32, #tpu.memory_space<vmem>>, vector<16x8xf32>,
    %75 = vector.extract_strided_slice %12 {offsets = [0, 2], sizes = [16, 1], strides = [1, 1]} : vector<16x4xf32> to vector<16x1xf32>
    %76 = vector.extract_strided_slice %13 {offsets = [2, 0], sizes = [1, 16], strides = [1, 1]} : vector<4x16xf32> to vector<1x16xf32>
    %77 = vector.broadcast %75 : vector<16x1xf32> to vector<16x16xf32>
    %78 = vector.broadcast %76 : vector<1x16xf32> to vector<16x16xf32>
    %79 = arith.addf %77, %78 : vector<16x16xf32>
    %cst_24 = arith.constant 2.000000e-01 : f32
    %80 = vector.broadcast %cst_24 : f32 to vector<16x16xf32>
    %81 = arith.mulf %80, %79 : vector<16x16xf32>
    %82 = arith.maximumf %79, %81 : vector<16x16xf32>
    %83 = arith.addf %82, %6 : vector<16x16xf32>
    %cst_25 = arith.constant dense<0xFF800000> : vector<16xf32>
    %84 = vector.multi_reduction <maximumf>, %83, %cst_25 [1] : vector<16x16xf32> to vector<16xf32>
    %85 = vector.shape_cast %84 : vector<16xf32> to vector<16x1xf32>
    %86 = vector.broadcast %85 : vector<16x1xf32> to vector<16x16xf32>
    %87 = arith.subf %83, %86 : vector<16x16xf32>
    %88 = math.exp %87 : vector<16x16xf32>
    %cst_26 = arith.constant dense<0.000000e+00> : vector<16xf32>
    %89 = vector.multi_reduction <add>, %88, %cst_26 [1] : vector<16x16xf32> to vector<16xf32>
    %90 = vector.shape_cast %89 : vector<16xf32> to vector<16x1xf32>
    %cst_27 = arith.constant 1.000000e-30 : f32
    %91 = vector.broadcast %cst_27 : f32 to vector<16x1xf32>
    %92 = arith.maximumf %90, %91 : vector<16x1xf32>
    %93 = tpu.reciprocal %92 {approx = true} : vector<16x1xf32> -> vector<16x1xf32>
    %94 = vector.broadcast %93 : vector<16x1xf32> to vector<16x16xf32>
    %95 = arith.mulf %88, %94 : vector<16x16xf32>
    %96 = arith.truncf %95 : vector<16x16xf32> to vector<16x16xbf16>
    %97 = vector.extract_strided_slice %10 {offsets = [0, 16], sizes = [16, 8], strides = [1, 1]} : vector<16x32xbf16> to vector<16x8xbf16>
    %cst_28 = arith.constant dense<0.000000e+00> : vector<16x8xf32>
    %98 = tpu.matmul %96, %97, %cst_28 {dimension_numbers = #tpu.dot_dimension_numbers<[1], [0], [0], [1], [0, 0, 1, 1], [], []>} : vector<16x16xbf16>, vector<16x8xbf16>, vector<16x8xf32> -> vector<16x8xf32>
    %99 = vector.extract_strided_slice %14 {offsets = [0, 16], sizes = [1, 8], strides = [1, 1]} : vector<1x32xf32> to vector<1x8xf32>
    %100 = vector.broadcast %99 : vector<1x8xf32> to vector<16x8xf32>
    %101 = arith.addf %98, %100 : vector<16x8xf32>
    %cst_29 = arith.constant 0.000000e+00 : f32
    %102 = vector.broadcast %cst_29 : f32 to vector<16x8xf32>
    %103 = arith.maximumf %101, %102 : vector<16x8xf32>
    %c0_30 = arith.constant 0 : index
    %c16 = arith.constant 16 : index
    %104 = vector.load %arg10[%c0_30, %c16] : memref<16x32xf32, #tpu.memory_space<vmem>>, vector<16x8xf32>
    tpu.vector_store %arg10[%c0_30, %c16], %103 {strides = array<i32>} : memref<16x32xf32, #tpu.memory_space<vmem>>, vector<16x8xf32>,
    %105 = vector.extract_strided_slice %12 {offsets = [0, 3], sizes = [16, 1], strides = [1, 1]} : vector<16x4xf32> to vector<16x1xf32>
    %106 = vector.extract_strided_slice %13 {offsets = [3, 0], sizes = [1, 16], strides = [1, 1]} : vector<4x16xf32> to vector<1x16xf32>
    %107 = vector.broadcast %105 : vector<16x1xf32> to vector<16x16xf32>
    %108 = vector.broadcast %106 : vector<1x16xf32> to vector<16x16xf32>
    %109 = arith.addf %107, %108 : vector<16x16xf32>
    %cst_31 = arith.constant 2.000000e-01 : f32
    %110 = vector.broadcast %cst_31 : f32 to vector<16x16xf32>
    %111 = arith.mulf %110, %109 : vector<16x16xf32>
    %112 = arith.maximumf %109, %111 : vector<16x16xf32>
    %113 = arith.addf %112, %6 : vector<16x16xf32>
    %cst_32 = arith.constant dense<0xFF800000> : vector<16xf32>
    %114 = vector.multi_reduction <maximumf>, %113, %cst_32 [1] : vector<16x16xf32> to vector<16xf32>
    %115 = vector.shape_cast %114 : vector<16xf32> to vector<16x1xf32>
    %116 = vector.broadcast %115 : vector<16x1xf32> to vector<16x16xf32>
    %117 = arith.subf %113, %116 : vector<16x16xf32>
    %118 = math.exp %117 : vector<16x16xf32>
    %cst_33 = arith.constant dense<0.000000e+00> : vector<16xf32>
    %119 = vector.multi_reduction <add>, %118, %cst_33 [1] : vector<16x16xf32> to vector<16xf32>
    %120 = vector.shape_cast %119 : vector<16xf32> to vector<16x1xf32>
    %cst_34 = arith.constant 1.000000e-30 : f32
    %121 = vector.broadcast %cst_34 : f32 to vector<16x1xf32>
    %122 = arith.maximumf %120, %121 : vector<16x1xf32>
    %123 = tpu.reciprocal %122 {approx = true} : vector<16x1xf32> -> vector<16x1xf32>
    %124 = vector.broadcast %123 : vector<16x1xf32> to vector<16x16xf32>
    %125 = arith.mulf %118, %124 : vector<16x16xf32>
    %126 = arith.truncf %125 : vector<16x16xf32> to vector<16x16xbf16>
    %127 = vector.extract_strided_slice %10 {offsets = [0, 24], sizes = [16, 8], strides = [1, 1]} : vector<16x32xbf16> to vector<16x8xbf16>
    %cst_35 = arith.constant dense<0.000000e+00> : vector<16x8xf32>
    %128 = tpu.matmul %126, %127, %cst_35 {dimension_numbers = #tpu.dot_dimension_numbers<[1], [0], [0], [1], [0, 0, 1, 1], [], []>} : vector<16x16xbf16>, vector<16x8xbf16>, vector<16x8xf32> -> vector<16x8xf32>
    %129 = vector.extract_strided_slice %14 {offsets = [0, 24], sizes = [1, 8], strides = [1, 1]} : vector<1x32xf32> to vector<1x8xf32>
    %130 = vector.broadcast %129 : vector<1x8xf32> to vector<16x8xf32>
    %131 = arith.addf %128, %130 : vector<16x8xf32>
    %cst_36 = arith.constant 0.000000e+00 : f32
    %132 = vector.broadcast %cst_36 : f32 to vector<16x8xf32>
    %133 = arith.maximumf %131, %132 : vector<16x8xf32>
    %c0_37 = arith.constant 0 : index
    %c24 = arith.constant 24 : index
    %134 = vector.load %arg10[%c0_37, %c24] : memref<16x32xf32, #tpu.memory_space<vmem>>, vector<16x8xf32>
    tpu.vector_store %arg10[%c0_37, %c24], %133 {strides = array<i32>} : memref<16x32xf32, #tpu.memory_space<vmem>>, vector<16x8xf32>,
    %c0_38 = arith.constant 0 : index
    %c0_39 = arith.constant 0 : index
    %135 = vector.load %arg10[%c0_38, %c0_39] : memref<16x32xf32, #tpu.memory_space<vmem>>, vector<16x32xf32>
    %136 = arith.truncf %135 : vector<16x32xf32> to vector<16x32xbf16>
    %c0_40 = arith.constant 0 : index
    %c0_41 = arith.constant 0 : index
    %137 = vector.load %arg4[%c0_40, %c0_41] : memref<32x40xbf16, #tpu.memory_space<vmem>>, vector<32x40xbf16>
    %cst_42 = arith.constant dense<0.000000e+00> : vector<16x40xf32>
    %138 = tpu.matmul %136, %137, %cst_42 {dimension_numbers = #tpu.dot_dimension_numbers<[1], [0], [0], [1], [0, 0, 1, 1], [], []>} : vector<16x32xbf16>, vector<32x40xbf16>, vector<16x40xf32> -> vector<16x40xf32>
    %139 = vector.extract_strided_slice %138 {offsets = [0, 0], sizes = [16, 32], strides = [1, 1]} : vector<16x40xf32> to vector<16x32xf32>
    %140 = arith.truncf %139 : vector<16x32xf32> to vector<16x32xbf16>
    %141 = vector.extract_strided_slice %138 {offsets = [0, 32], sizes = [16, 4], strides = [1, 1]} : vector<16x40xf32> to vector<16x4xf32>
    %142 = vector.extract_strided_slice %138 {offsets = [0, 36], sizes = [16, 4], strides = [1, 1]} : vector<16x40xf32> to vector<16x4xf32>
    %143 = tpu.transpose %141, [1, 0] : vector<16x4xf32> -> vector<4x16xf32>
    %c0_43 = arith.constant 0 : index
    %c0_44 = arith.constant 0 : index
    %144 = vector.load %arg5[%c0_43, %c0_44] : memref<1x32xf32, #tpu.memory_space<vmem>>, vector<1x32xf32>
    %145 = vector.extract_strided_slice %142 {offsets = [0, 0], sizes = [16, 1], strides = [1, 1]} : vector<16x4xf32> to vector<16x1xf32>
    %146 = vector.extract_strided_slice %143 {offsets = [0, 0], sizes = [1, 16], strides = [1, 1]} : vector<4x16xf32> to vector<1x16xf32>
    %147 = vector.broadcast %145 : vector<16x1xf32> to vector<16x16xf32>
    %148 = vector.broadcast %146 : vector<1x16xf32> to vector<16x16xf32>
    %149 = arith.addf %147, %148 : vector<16x16xf32>
    %cst_45 = arith.constant 2.000000e-01 : f32
    %150 = vector.broadcast %cst_45 : f32 to vector<16x16xf32>
    %151 = arith.mulf %150, %149 : vector<16x16xf32>
    %152 = arith.maximumf %149, %151 : vector<16x16xf32>
    %153 = arith.addf %152, %6 : vector<16x16xf32>
    %cst_46 = arith.constant dense<0xFF800000> : vector<16xf32>
    %154 = vector.multi_reduction <maximumf>, %153, %cst_46 [1] : vector<16x16xf32> to vector<16xf32>
    %155 = vector.shape_cast %154 : vector<16xf32> to vector<16x1xf32>
    %156 = vector.broadcast %155 : vector<16x1xf32> to vector<16x16xf32>
    %157 = arith.subf %153, %156 : vector<16x16xf32>
    %158 = math.exp %157 : vector<16x16xf32>
    %cst_47 = arith.constant dense<0.000000e+00> : vector<16xf32>
    %159 = vector.multi_reduction <add>, %158, %cst_47 [1] : vector<16x16xf32> to vector<16xf32>
    %160 = vector.shape_cast %159 : vector<16xf32> to vector<16x1xf32>
    %cst_48 = arith.constant 1.000000e-30 : f32
    %161 = vector.broadcast %cst_48 : f32 to vector<16x1xf32>
    %162 = arith.maximumf %160, %161 : vector<16x1xf32>
    %163 = tpu.reciprocal %162 {approx = true} : vector<16x1xf32> -> vector<16x1xf32>
    %164 = vector.broadcast %163 : vector<16x1xf32> to vector<16x16xf32>
    %165 = arith.mulf %158, %164 : vector<16x16xf32>
    %166 = arith.truncf %165 : vector<16x16xf32> to vector<16x16xbf16>
    %167 = vector.extract_strided_slice %140 {offsets = [0, 0], sizes = [16, 8], strides = [1, 1]} : vector<16x32xbf16> to vector<16x8xbf16>
    %cst_49 = arith.constant dense<0.000000e+00> : vector<16x8xf32>
    %168 = tpu.matmul %166, %167, %cst_49 {dimension_numbers = #tpu.dot_dimension_numbers<[1], [0], [0], [1], [0, 0, 1, 1], [], []>} : vector<16x16xbf16>, vector<16x8xbf16>, vector<16x8xf32> -> vector<16x8xf32>
    %169 = vector.extract_strided_slice %144 {offsets = [0, 0], sizes = [1, 8], strides = [1, 1]} : vector<1x32xf32> to vector<1x8xf32>
    %170 = vector.broadcast %169 : vector<1x8xf32> to vector<16x8xf32>
    %171 = arith.addf %168, %170 : vector<16x8xf32>
    %c0_50 = arith.constant 0 : index
    %c0_51 = arith.constant 0 : index
    %172 = vector.load %arg11[%c0_50, %c0_51] : memref<16x32xf32, #tpu.memory_space<vmem>>, vector<16x8xf32>
    tpu.vector_store %arg11[%c0_50, %c0_51], %171 {strides = array<i32>} : memref<16x32xf32, #tpu.memory_space<vmem>>, vector<16x8xf32>,
    %173 = vector.extract_strided_slice %142 {offsets = [0, 1], sizes = [16, 1], strides = [1, 1]} : vector<16x4xf32> to vector<16x1xf32>
    %174 = vector.extract_strided_slice %143 {offsets = [1, 0], sizes = [1, 16], strides = [1, 1]} : vector<4x16xf32> to vector<1x16xf32>
    %175 = vector.broadcast %173 : vector<16x1xf32> to vector<16x16xf32>
    %176 = vector.broadcast %174 : vector<1x16xf32> to vector<16x16xf32>
    %177 = arith.addf %175, %176 : vector<16x16xf32>
    %cst_52 = arith.constant 2.000000e-01 : f32
    %178 = vector.broadcast %cst_52 : f32 to vector<16x16xf32>
    %179 = arith.mulf %178, %177 : vector<16x16xf32>
    %180 = arith.maximumf %177, %179 : vector<16x16xf32>
    %181 = arith.addf %180, %6 : vector<16x16xf32>
    %cst_53 = arith.constant dense<0xFF800000> : vector<16xf32>
    %182 = vector.multi_reduction <maximumf>, %181, %cst_53 [1] : vector<16x16xf32> to vector<16xf32>
    %183 = vector.shape_cast %182 : vector<16xf32> to vector<16x1xf32>
    %184 = vector.broadcast %183 : vector<16x1xf32> to vector<16x16xf32>
    %185 = arith.subf %181, %184 : vector<16x16xf32>
    %186 = math.exp %185 : vector<16x16xf32>
    %cst_54 = arith.constant dense<0.000000e+00> : vector<16xf32>
    %187 = vector.multi_reduction <add>, %186, %cst_54 [1] : vector<16x16xf32> to vector<16xf32>
    %188 = vector.shape_cast %187 : vector<16xf32> to vector<16x1xf32>
    %cst_55 = arith.constant 1.000000e-30 : f32
    %189 = vector.broadcast %cst_55 : f32 to vector<16x1xf32>
    %190 = arith.maximumf %188, %189 : vector<16x1xf32>
    %191 = tpu.reciprocal %190 {approx = true} : vector<16x1xf32> -> vector<16x1xf32>
    %192 = vector.broadcast %191 : vector<16x1xf32> to vector<16x16xf32>
    %193 = arith.mulf %186, %192 : vector<16x16xf32>
    %194 = arith.truncf %193 : vector<16x16xf32> to vector<16x16xbf16>
    %195 = vector.extract_strided_slice %140 {offsets = [0, 8], sizes = [16, 8], strides = [1, 1]} : vector<16x32xbf16> to vector<16x8xbf16>
    %cst_56 = arith.constant dense<0.000000e+00> : vector<16x8xf32>
    %196 = tpu.matmul %194, %195, %cst_56 {dimension_numbers = #tpu.dot_dimension_numbers<[1], [0], [0], [1], [0, 0, 1, 1], [], []>} : vector<16x16xbf16>, vector<16x8xbf16>, vector<16x8xf32> -> vector<16x8xf32>
    %197 = vector.extract_strided_slice %144 {offsets = [0, 8], sizes = [1, 8], strides = [1, 1]} : vector<1x32xf32> to vector<1x8xf32>
    %198 = vector.broadcast %197 : vector<1x8xf32> to vector<16x8xf32>
    %199 = arith.addf %196, %198 : vector<16x8xf32>
    %c0_57 = arith.constant 0 : index
    %c8_58 = arith.constant 8 : index
    %200 = vector.load %arg11[%c0_57, %c8_58] : memref<16x32xf32, #tpu.memory_space<vmem>>, vector<16x8xf32>
    tpu.vector_store %arg11[%c0_57, %c8_58], %199 {strides = array<i32>} : memref<16x32xf32, #tpu.memory_space<vmem>>, vector<16x8xf32>,
    %201 = vector.extract_strided_slice %142 {offsets = [0, 2], sizes = [16, 1], strides = [1, 1]} : vector<16x4xf32> to vector<16x1xf32>
    %202 = vector.extract_strided_slice %143 {offsets = [2, 0], sizes = [1, 16], strides = [1, 1]} : vector<4x16xf32> to vector<1x16xf32>
    %203 = vector.broadcast %201 : vector<16x1xf32> to vector<16x16xf32>
    %204 = vector.broadcast %202 : vector<1x16xf32> to vector<16x16xf32>
    %205 = arith.addf %203, %204 : vector<16x16xf32>
    %cst_59 = arith.constant 2.000000e-01 : f32
    %206 = vector.broadcast %cst_59 : f32 to vector<16x16xf32>
    %207 = arith.mulf %206, %205 : vector<16x16xf32>
    %208 = arith.maximumf %205, %207 : vector<16x16xf32>
    %209 = arith.addf %208, %6 : vector<16x16xf32>
    %cst_60 = arith.constant dense<0xFF800000> : vector<16xf32>
    %210 = vector.multi_reduction <maximumf>, %209, %cst_60 [1] : vector<16x16xf32> to vector<16xf32>
    %211 = vector.shape_cast %210 : vector<16xf32> to vector<16x1xf32>
    %212 = vector.broadcast %211 : vector<16x1xf32> to vector<16x16xf32>
    %213 = arith.subf %209, %212 : vector<16x16xf32>
    %214 = math.exp %213 : vector<16x16xf32>
    %cst_61 = arith.constant dense<0.000000e+00> : vector<16xf32>
    %215 = vector.multi_reduction <add>, %214, %cst_61 [1] : vector<16x16xf32> to vector<16xf32>
    %216 = vector.shape_cast %215 : vector<16xf32> to vector<16x1xf32>
    %cst_62 = arith.constant 1.000000e-30 : f32
    %217 = vector.broadcast %cst_62 : f32 to vector<16x1xf32>
    %218 = arith.maximumf %216, %217 : vector<16x1xf32>
    %219 = tpu.reciprocal %218 {approx = true} : vector<16x1xf32> -> vector<16x1xf32>
    %220 = vector.broadcast %219 : vector<16x1xf32> to vector<16x16xf32>
    %221 = arith.mulf %214, %220 : vector<16x16xf32>
    %222 = arith.truncf %221 : vector<16x16xf32> to vector<16x16xbf16>
    %223 = vector.extract_strided_slice %140 {offsets = [0, 16], sizes = [16, 8], strides = [1, 1]} : vector<16x32xbf16> to vector<16x8xbf16>
    %cst_63 = arith.constant dense<0.000000e+00> : vector<16x8xf32>
    %224 = tpu.matmul %222, %223, %cst_63 {dimension_numbers = #tpu.dot_dimension_numbers<[1], [0], [0], [1], [0, 0, 1, 1], [], []>} : vector<16x16xbf16>, vector<16x8xbf16>, vector<16x8xf32> -> vector<16x8xf32>
    %225 = vector.extract_strided_slice %144 {offsets = [0, 16], sizes = [1, 8], strides = [1, 1]} : vector<1x32xf32> to vector<1x8xf32>
    %226 = vector.broadcast %225 : vector<1x8xf32> to vector<16x8xf32>
    %227 = arith.addf %224, %226 : vector<16x8xf32>
    %c0_64 = arith.constant 0 : index
    %c16_65 = arith.constant 16 : index
    %228 = vector.load %arg11[%c0_64, %c16_65] : memref<16x32xf32, #tpu.memory_space<vmem>>, vector<16x8xf32>
    tpu.vector_store %arg11[%c0_64, %c16_65], %227 {strides = array<i32>} : memref<16x32xf32, #tpu.memory_space<vmem>>, vector<16x8xf32>,
    %229 = vector.extract_strided_slice %142 {offsets = [0, 3], sizes = [16, 1], strides = [1, 1]} : vector<16x4xf32> to vector<16x1xf32>
    %230 = vector.extract_strided_slice %143 {offsets = [3, 0], sizes = [1, 16], strides = [1, 1]} : vector<4x16xf32> to vector<1x16xf32>
    %231 = vector.broadcast %229 : vector<16x1xf32> to vector<16x16xf32>
    %232 = vector.broadcast %230 : vector<1x16xf32> to vector<16x16xf32>
    %233 = arith.addf %231, %232 : vector<16x16xf32>
    %cst_66 = arith.constant 2.000000e-01 : f32
    %234 = vector.broadcast %cst_66 : f32 to vector<16x16xf32>
    %235 = arith.mulf %234, %233 : vector<16x16xf32>
    %236 = arith.maximumf %233, %235 : vector<16x16xf32>
    %237 = arith.addf %236, %6 : vector<16x16xf32>
    %cst_67 = arith.constant dense<0xFF800000> : vector<16xf32>
    %238 = vector.multi_reduction <maximumf>, %237, %cst_67 [1] : vector<16x16xf32> to vector<16xf32>
    %239 = vector.shape_cast %238 : vector<16xf32> to vector<16x1xf32>
    %240 = vector.broadcast %239 : vector<16x1xf32> to vector<16x16xf32>
    %241 = arith.subf %237, %240 : vector<16x16xf32>
    %242 = math.exp %241 : vector<16x16xf32>
    %cst_68 = arith.constant dense<0.000000e+00> : vector<16xf32>
    %243 = vector.multi_reduction <add>, %242, %cst_68 [1] : vector<16x16xf32> to vector<16xf32>
    %244 = vector.shape_cast %243 : vector<16xf32> to vector<16x1xf32>
    %cst_69 = arith.constant 1.000000e-30 : f32
    %245 = vector.broadcast %cst_69 : f32 to vector<16x1xf32>
    %246 = arith.maximumf %244, %245 : vector<16x1xf32>
    %247 = tpu.reciprocal %246 {approx = true} : vector<16x1xf32> -> vector<16x1xf32>
    %248 = vector.broadcast %247 : vector<16x1xf32> to vector<16x16xf32>
    %249 = arith.mulf %242, %248 : vector<16x16xf32>
    %250 = arith.truncf %249 : vector<16x16xf32> to vector<16x16xbf16>
    %251 = vector.extract_strided_slice %140 {offsets = [0, 24], sizes = [16, 8], strides = [1, 1]} : vector<16x32xbf16> to vector<16x8xbf16>
    %cst_70 = arith.constant dense<0.000000e+00> : vector<16x8xf32>
    %252 = tpu.matmul %250, %251, %cst_70 {dimension_numbers = #tpu.dot_dimension_numbers<[1], [0], [0], [1], [0, 0, 1, 1], [], []>} : vector<16x16xbf16>, vector<16x8xbf16>, vector<16x8xf32> -> vector<16x8xf32>
    %253 = vector.extract_strided_slice %144 {offsets = [0, 24], sizes = [1, 8], strides = [1, 1]} : vector<1x32xf32> to vector<1x8xf32>
    %254 = vector.broadcast %253 : vector<1x8xf32> to vector<16x8xf32>
    %255 = arith.addf %252, %254 : vector<16x8xf32>
    %c0_71 = arith.constant 0 : index
    %c24_72 = arith.constant 24 : index
    %256 = vector.load %arg11[%c0_71, %c24_72] : memref<16x32xf32, #tpu.memory_space<vmem>>, vector<16x8xf32>
    tpu.vector_store %arg11[%c0_71, %c24_72], %255 {strides = array<i32>} : memref<16x32xf32, #tpu.memory_space<vmem>>, vector<16x8xf32>,
    %c0_73 = arith.constant 0 : index
    %c0_74 = arith.constant 0 : index
    %257 = vector.load %arg11[%c0_73, %c0_74] : memref<16x32xf32, #tpu.memory_space<vmem>>, vector<16x32xf32>
    %c0_75 = arith.constant 0 : index
    %c0_76 = arith.constant 0 : index
    %258 = vector.load %arg6[%c0_75, %c0_76] : memref<2x16xbf16, #tpu.memory_space<vmem>>, vector<2x16xbf16>
    %259 = arith.truncf %257 : vector<16x32xf32> to vector<16x32xbf16>
    %cst_77 = arith.constant dense<0.000000e+00> : vector<2x32xf32>
    %260 = tpu.matmul %258, %259, %cst_77 {dimension_numbers = #tpu.dot_dimension_numbers<[1], [0], [0], [1], [0, 0, 1, 1], [], []>} : vector<2x16xbf16>, vector<16x32xbf16>, vector<2x32xf32> -> vector<2x32xf32>
    %261 = arith.truncf %260 : vector<2x32xf32> to vector<2x32xbf16>
    %c0_78 = arith.constant 0 : index
    %c0_79 = arith.constant 0 : index
    %262 = vector.load %arg7[%c0_78, %c0_79] : memref<32x128xbf16, #tpu.memory_space<vmem>>, vector<32x128xbf16>
    %cst_80 = arith.constant dense<0.000000e+00> : vector<2x128xf32>
    %263 = tpu.matmul %261, %262, %cst_80 {dimension_numbers = #tpu.dot_dimension_numbers<[1], [0], [0], [1], [0, 0, 1, 1], [], []>} : vector<2x32xbf16>, vector<32x128xbf16>, vector<2x128xf32> -> vector<2x128xf32>
    %c0_81 = arith.constant 0 : index
    %c0_82 = arith.constant 0 : index
    %264 = vector.load %arg8[%c0_81, %c0_82] : memref<1x128xf32, #tpu.memory_space<vmem>>, vector<1x128xf32>
    %265 = vector.broadcast %264 : vector<1x128xf32> to vector<2x128xf32>
    %266 = arith.addf %263, %265 : vector<2x128xf32>
    %c0_83 = arith.constant 0 : index
    %c0_84 = arith.constant 0 : index
    %267 = vector.load %arg9[%c0_83, %c0_84] : memref<2x128xf32, #tpu.memory_space<vmem>>, vector<2x128xf32>
    tpu.vector_store %arg9[%c0_83, %c0_84], %266 {strides = array<i32>} : memref<2x128xf32, #tpu.memory_space<vmem>>, vector<2x128xf32>,
    return
  }
}

</mosaic_0001>

<llo_original>
// kernel: gat_forward.1
$region0: #{gat_forward.1}
  #allocation0 [shape = 'u32[]', space=smem, size = 0x4, offset = 0x4, fixed_abs, tag = 'smem constant byte address 0x4 - core index']
  #allocation1 [shape = 'u32[72,128]{1,0:T(1,128)}', space=vmem, size = 0x9000, scoped, tag = 'internal scratch']
  #allocation2 [shape = 'f32[16,32]{1,0:T(8,128)}', space=vmem, size = 0x2000, scoped, tag = 'scratch operand']
  #allocation3 [shape = 'f32[16,32]{1,0:T(8,128)}', space=vmem, size = 0x2000, scoped, tag = 'scratch operand']
  %s0 = inlined_call_operand.vmem [shape: f32[16,8], index: 0, kind: input, shape index: {}]
  %s1 = inlined_call_operand.vmem [shape: f32[16,16], index: 1, kind: input, shape index: {}]
  %s2 = inlined_call_operand.vmem [shape: bf16[8,40], index: 2, kind: input, shape index: {}]
  %s3 = inlined_call_operand.vmem [shape: f32[1,32], index: 3, kind: input, shape index: {}]
  %s4 = inlined_call_operand.vmem [shape: bf16[32,40], index: 4, kind: input, shape index: {}]
  %s5 = inlined_call_operand.vmem [shape: f32[1,32], index: 5, kind: input, shape index: {}]
  %s6 = inlined_call_operand.vmem [shape: bf16[2,16], index: 6, kind: input, shape index: {}]
  %s7 = inlined_call_operand.vmem [shape: bf16[32,128], index: 7, kind: input, shape index: {}]
  %s8 = inlined_call_operand.vmem [shape: f32[1,128], index: 8, kind: input, shape index: {}]
  %s9 = inlined_call_operand.hbm [shape: f32[2,128], index: 9, kind: output, shape index: {}]
  %s10 = sld [smem:[#allocation0]]
  $region46: #{gat_forward.1} parent=0
    _
  %s12 = ssub.s32 1, %s10
  %s13 = scalar_select 0, %s12, %s10
  $region1: #{gat_forward.1} parent=0
    #allocation4 [shape = 'u8[1024]{0}', space=vmem, size = 0x400, scoped, tag = 'output window, operand 0, single buffered']
    #allocation5 [shape = 's32[1]{0}', space=sflag, size = 0x4, scoped, tag = 'scoped memory for gat_forward.1']
    %14 = vsyncpa [#allocation5], 0
    // Predicated region
    $region2: #{gat_forward.1} parent=1 // pred_check
      _
    $region3: #{gat_forward.1} parent=1 // pred_check_branch
      %16 = sbr.rel (0) target = $region5
    $region4: #{gat_forward.1} parent=1 // pred_region
      _
    $region5: #{gat_forward.1} parent=1 // pred_fallthru
      _
    // Predicated region
    $region6: #{gat_forward.1} parent=1 // pred_check
      _
    $region7: #{gat_forward.1} parent=1 // pred_check_branch
      %18 = sbr.rel (0) target = $region9
    $region8: #{gat_forward.1} parent=1 // pred_region
      _
    $region9: #{gat_forward.1} parent=1 // pred_fallthru
      _
    // Predicated region
    $region10: #{gat_forward.1} parent=1 // pred_check
      _
    $region11: #{gat_forward.1} parent=1 // pred_check_branch
      %20 = sbr.rel (0) target = $region13
    $region12: #{gat_forward.1} parent=1 // pred_region
      _
    $region13: #{gat_forward.1} parent=1 // pred_fallthru
      _
    // Predicated region
    $region14: #{gat_forward.1} parent=1 // pred_check
      _
    $region15: #{gat_forward.1} parent=1 // pred_check_branch
      %22 = sbr.rel (0) target = $region17
    $region16: #{gat_forward.1} parent=1 // pred_region
      _
    $region17: #{gat_forward.1} parent=1 // pred_fallthru
      _
    // Predicated region
    $region18: #{gat_forward.1} parent=1 // pred_check
      _
    $region19: #{gat_forward.1} parent=1 // pred_check_branch
      %24 = sbr.rel (0) target = $region21
    $region20: #{gat_forward.1} parent=1 // pred_region
      _
    $region21: #{gat_forward.1} parent=1 // pred_fallthru
      _
    // Predicated region
    $region22: #{gat_forward.1} parent=1 // pred_check
      _
    $region23: #{gat_forward.1} parent=1 // pred_check_branch
      %26 = sbr.rel (0) target = $region25
    $region24: #{gat_forward.1} parent=1 // pred_region
      _
    $region25: #{gat_forward.1} parent=1 // pred_fallthru
      _
    // Predicated region
    $region26: #{gat_forward.1} parent=1 // pred_check
      _
    $region27: #{gat_forward.1} parent=1 // pred_check_branch
      %28 = sbr.rel (0) target = $region29
    $region28: #{gat_forward.1} parent=1 // pred_region
      _
    $region29: #{gat_forward.1} parent=1 // pred_fallthru
      _
    // Predicated region
    $region30: #{gat_forward.1} parent=1 // pred_check
      _
    $region31: #{gat_forward.1} parent=1 // pred_check_branch
      %30 = sbr.rel (0) target = $region33
    $region32: #{gat_forward.1} parent=1 // pred_region
      _
    $region33: #{gat_forward.1} parent=1 // pred_fallthru
      _
    // Predicated region
    $region34: #{gat_forward.1} parent=1 // pred_check
      _
    $region35: #{gat_forward.1} parent=1 // pred_check_branch
      %32 = sbr.rel (0) target = $region37
    $region36: #{gat_forward.1} parent=1 // pred_region
      _
    $region37: #{gat_forward.1} parent=1 // pred_fallthru
      _
    %v34 = vld [vmem:[%s0] sm:$0xff]
    %v35 = vld [vmem:[%s0 + $0x8] sm:$0xff]
    %v36 = vpack.c.bf16 %v35, %v34
    %v37 = vld [vmem:[%s1] sm:$0xff]
    %v38 = vld [vmem:[%s1 + $0x8] sm:$0xff]
    %v39 = vsub.f32 %v37, 1.0
    %v40 = vsub.f32 %v38, 1.0
    %v41 = vmul.f32 %v39, 1e+30
    %v42 = vmul.f32 %v40, 1e+30
    %v43 = vld [vmem:[%s2] sm:$0xf]
    %vm44 = vcmask 64512
    %v46 = vsel %vm44, %v36, 0
    %vm48 = vcmask 1043456
    %v50 = vsel %vm48, %v43, 0
    %52 = vmatpush.bf16.msra.mxu0 0
    %53 = vmatpush.bf16.msra.mxu0 0
    %54 = vmatpush.bf16.msra.mxu0 0
    %55 = vmatpush.bf16.msra.mxu0 0
    %56 = vmatpush.bf16.msra.mxu0 0
    %57 = vmatpush.bf16.msra.mxu0 0
    %58 = vmatpush.bf16.msra.mxu0 0
    %59 = vmatpush.bf16.msra.mxu0 %v50
    %60 = vmatmul.bf16.gmra.mxu0 %v46
    %v61 = vpop.f32.mrf.mxu0
    %v62 = vadd.f32 0.0, %v61
    %v63 = vpop.f32.mrf.mxu0
    %v64 = vadd.f32 0.0, %v63
    %65 = vdwg.mxu0
    %v66 = vpack.c.bf16 %v62, %v62
    %v67 = vpack.c.bf16 %v64, %v64
    %70 = vrot.lane.b32.xlu0 %v62, 96
    %v71 = vpop.permute.xlu0 %70
    %72 = vrot.lane.b32.xlu0 %v64, 96
    %v73 = vpop.permute.xlu0 %72
    %76 = vxpose.xlu0.b32.start [1/16] %v71, 128
    %77 = vxpose.xlu0.b32.cont [2/16] %v73, 128
    %78 = vxpose.xlu0.b32.cont [3/16] 0.0, 128
    %79 = vxpose.xlu0.b32.cont [4/16] 0.0, 128
    %80 = vxpose.xlu0.b32.cont [5/16] 0.0, 128
    %81 = vxpose.xlu0.b32.cont [6/16] 0.0, 128
    %82 = vxpose.xlu0.b32.cont [7/16] 0.0, 128
    %83 = vxpose.xlu0.b32.cont [8/16] 0.0, 128
    %84 = vxpose.xlu0.b32.cont [9/16] 0.0, 128
    %85 = vxpose.xlu0.b32.cont [10/16] 0.0, 128
    %86 = vxpose.xlu0.b32.cont [11/16] 0.0, 128
    %87 = vxpose.xlu0.b32.cont [12/16] 0.0, 128
    %88 = vxpose.xlu0.b32.cont [13/16] 0.0, 128
    %89 = vxpose.xlu0.b32.cont [14/16] 0.0, 128
    %90 = vxpose.xlu0.b32.cont [15/16] 0.0, 128
    %91 = vxpose.xlu0.b32.end [16/16] 0.0, 128
    %v92 = vpop.trf.xlu0
    %v93 = vpop.trf.xlu0
    %v94 = vpop.trf.xlu0
    %v95 = vpop.trf.xlu0
    %v96 = vpop.trf.xlu0
    %v97 = vpop.trf.xlu0
    %v98 = vpop.trf.xlu0
    %v99 = vpop.trf.xlu0
    %v100 = vpop.trf.xlu0
    %v101 = vpop.trf.xlu0
    %v102 = vpop.trf.xlu0
    %v103 = vpop.trf.xlu0
    %v104 = vpop.trf.xlu0
    %v105 = vpop.trf.xlu0
    %v106 = vpop.trf.xlu0
    %v107 = vpop.trf.xlu0
    %v108 = vld [vmem:[%s3] sm:$0x1]
    %109 = vset.pattern.permute.xlu0 36
    %110 = vperm.xlu0 %109, %v62
    %v111 = vpop.permute.xlu0 %110
    %113 = vset.pattern.permute.xlu0 36
    %114 = vperm.xlu0 %113, %v64
    %v115 = vpop.permute.xlu0 %114
    %v117 = vperm.slane %v92, 0
    %v118 = vadd.f32 %v111, %v117
    %v119 = vadd.f32 %v115, %v117
    %v120 = vmul.f32 %v118, 0.2
    %v121 = vmul.f32 %v119, 0.2
    %v122 = vmax.f32 %v118, %v120
    %v123 = vmax.f32 %v119, %v121
    %v124 = vadd.f32 %v122, %v41
    %v125 = vadd.f32 %v123, %v42
    %vm126 = vcmask 130048
    %v127 = vsel %vm126, %v124, -inf
    %128 = vmax.xlane.f32.xlu0 %v127
    %v129 = vpop.xlane.xlu0 %128
    %v130 = vsel %vm126, %v125, -inf
    %131 = vmax.xlane.f32.xlu0 %v130
    %v132 = vpop.xlane.xlu0 %131
    %v133 = vsub.f32 %v124, %v129
    %v134 = vsub.f32 %v125, %v132
    %v135 = vmul.f32 %v133, 1.442695
    %v136 = vpow.pop %v135
    %v137 = vmul.f32 %v134, 1.442695
    %v138 = vpow.pop %v137
    %v139 = vsel %vm126, %v136, 0.0
    %140 = vadd.xlane.f32.xlu0 %v139
    %v141 = vpop.xlane.xlu0 %140
    %v142 = vsel %vm126, %v138, 0.0
    %143 = vadd.xlane.f32.xlu0 %v142
    %v144 = vpop.xlane.xlu0 %143
    %v145 = vmax.f32 %v141, 1e-30
    %v146 = vmax.f32 %v144, 1e-30
    %v147 = vrcp.pop %v145
    %v148 = vrcp.pop %v146
    %v149 = vmul.f32 %v136, %v147
    %v150 = vmul.f32 %v138, %v148
    %v151 = vpack.c.bf16 %v150, %v149
    %v153 = vperm.slane %v108, 0
    %v157 = vunpack.c.l.b16 %v66
    %v158 = vunpack.c.l.b16 %v67
    %v159 = vpack.c.b16 %v158, %v157
    %v162 = vsel %vm126, %v151, 0
    %164 = vmatpush.bf16.msra.mxu0 0
    %165 = vmatpush.bf16.msra.mxu0 0
    %166 = vmatpush.bf16.msra.mxu0 0
    %167 = vmatpush.bf16.msra.mxu0 0
    %168 = vmatpush.bf16.msra.mxu0 0
    %169 = vmatpush.bf16.msra.mxu0 0
    %170 = vmatpush.bf16.msra.mxu0 0
    %171 = vmatpush.bf16.msra.mxu0 %v159
    %172 = vmatmul.bf16.gmra.mxu0 %v162
    %v173 = vpop.f32.mrf.mxu0
    %v174 = vadd.f32 %v153, %v173
    %v175 = vpop.f32.mrf.mxu0
    %v176 = vadd.f32 %v153, %v175
    %177 = vdwg.mxu0
    %v178 = vmax.f32 %v174, 0.0
    %v179 = vmax.f32 %v176, 0.0
    %180 = vst.msk [vmem:[#allocation2] sm:$0xff] %vm44, %v178
    %181 = vst.msk [vmem:[#allocation2 + $0x8] sm:$0xff] %vm44, %v179
    %182 = vset.pattern.permute.xlu0 37
    %183 = vperm.xlu0 %182, %v62
    %v184 = vpop.permute.xlu0 %183
    %186 = vset.pattern.permute.xlu0 37
    %187 = vperm.xlu0 %186, %v64
    %v188 = vpop.permute.xlu0 %187
    %v190 = vperm.slane %v92, 1
    %v191 = vadd.f32 %v184, %v190
    %v192 = vadd.f32 %v188, %v190
    %v193 = vmul.f32 %v191, 0.2
    %v194 = vmul.f32 %v192, 0.2
    %v195 = vmax.f32 %v191, %v193
    %v196 = vmax.f32 %v192, %v194
    %v197 = vadd.f32 %v195, %v41
    %v198 = vadd.f32 %v196, %v42
    %v199 = vsel %vm126, %v197, -inf
    %200 = vmax.xlane.f32.xlu0 %v199
    %v201 = vpop.xlane.xlu0 %200
    %v202 = vsel %vm126, %v198, -inf
    %203 = vmax.xlane.f32.xlu0 %v202
    %v204 = vpop.xlane.xlu0 %203
    %v205 = vsub.f32 %v197, %v201
    %v206 = vsub.f32 %v198, %v204
    %v207 = vmul.f32 %v205, 1.442695
    %v208 = vpow.pop %v207
    %v209 = vmul.f32 %v206, 1.442695
    %v210 = vpow.pop %v209
    %v211 = vsel %vm126, %v208, 0.0
    %212 = vadd.xlane.f32.xlu0 %v211
    %v213 = vpop.xlane.xlu0 %212
    %v214 = vsel %vm126, %v210, 0.0
    %215 = vadd.xlane.f32.xlu0 %v214
    %v216 = vpop.xlane.xlu0 %215
    %v217 = vmax.f32 %v213, 1e-30
    %v218 = vmax.f32 %v216, 1e-30
    %v219 = vrcp.pop %v217
    %v220 = vrcp.pop %v218
    %v221 = vmul.f32 %v208, %v219
    %v222 = vmul.f32 %v210, %v220
    %v223 = vpack.c.bf16 %v222, %v221
    %224 = vrot.lane.b32.xlu0 %v159, 120
    %v225 = vpop.permute.xlu0 %224
    %227 = vrot.lane.b32.xlu0 %v153, 120
    %v228 = vpop.permute.xlu0 %227
    %v231 = vsel %vm126, %v223, 0
    %233 = vmatpush.bf16.msra.mxu0 0
    %234 = vmatpush.bf16.msra.mxu0 0
    %235 = vmatpush.bf16.msra.mxu0 0
    %236 = vmatpush.bf16.msra.mxu0 0
    %237 = vmatpush.bf16.msra.mxu0 0
    %238 = vmatpush.bf16.msra.mxu0 0
    %239 = vmatpush.bf16.msra.mxu0 0
    %240 = vmatpush.bf16.msra.mxu0 %v225
    %241 = vmatmul.bf16.gmra.mxu0 %v231
    %v242 = vpop.f32.mrf.mxu0
    %v243 = vadd.f32 %v228, %v242
    %v244 = vpop.f32.mrf.mxu0
    %v245 = vadd.f32 %v228, %v244
    %246 = vdwg.mxu0
    %v247 = vmax.f32 %v243, 0.0
    %v248 = vmax.f32 %v245, 0.0
    %251 = vrot.lane.b32.xlu0 %v247, 8
    %v252 = vpop.permute.xlu0 %251
    %253 = vrot.lane.b32.xlu0 %v248, 8
    %v254 = vpop.permute.xlu0 %253
    %vm257 = vcmask 130112
    %258 = vst.msk [vmem:[#allocation2] sm:$0xff] %vm257, %v252
    %259 = vst.msk [vmem:[#allocation2 + $0x8] sm:$0xff] %vm257, %v254
    %260 = vset.pattern.permute.xlu0 38
    %261 = vperm.xlu0 %260, %v62
    %v262 = vpop.permute.xlu0 %261
    %264 = vset.pattern.permute.xlu0 38
    %265 = vperm.xlu0 %264, %v64
    %v266 = vpop.permute.xlu0 %265
    %v268 = vperm.slane %v92, 2
    %v269 = vadd.f32 %v262, %v268
    %v270 = vadd.f32 %v266, %v268
    %v271 = vmul.f32 %v269, 0.2
    %v272 = vmul.f32 %v270, 0.2
    %v273 = vmax.f32 %v269, %v271
    %v274 = vmax.f32 %v270, %v272
    %v275 = vadd.f32 %v273, %v41
    %v276 = vadd.f32 %v274, %v42
    %v277 = vsel %vm126, %v275, -inf
    %278 = vmax.xlane.f32.xlu0 %v277
    %v279 = vpop.xlane.xlu0 %278
    %v280 = vsel %vm126, %v276, -inf
    %281 = vmax.xlane.f32.xlu0 %v280
    %v282 = vpop.xlane.xlu0 %281
    %v283 = vsub.f32 %v275, %v279
    %v284 = vsub.f32 %v276, %v282
    %v285 = vmul.f32 %v283, 1.442695
    %v286 = vpow.pop %v285
    %v287 = vmul.f32 %v284, 1.442695
    %v288 = vpow.pop %v287
    %v289 = vsel %vm126, %v286, 0.0
    %290 = vadd.xlane.f32.xlu0 %v289
    %v291 = vpop.xlane.xlu0 %290
    %v292 = vsel %vm126, %v288, 0.0
    %293 = vadd.xlane.f32.xlu0 %v292
    %v294 = vpop.xlane.xlu0 %293
    %v295 = vmax.f32 %v291, 1e-30
    %v296 = vmax.f32 %v294, 1e-30
    %v297 = vrcp.pop %v295
    %v298 = vrcp.pop %v296
    %v299 = vmul.f32 %v286, %v297
    %v300 = vmul.f32 %v288, %v298
    %v301 = vpack.c.bf16 %v300, %v299
    %302 = vrot.lane.b32.xlu0 %v159, 112
    %v303 = vpop.permute.xlu0 %302
    %305 = vrot.lane.b32.xlu0 %v153, 112
    %v306 = vpop.permute.xlu0 %305
    %v309 = vsel %vm126, %v301, 0
    %311 = vmatpush.bf16.msra.mxu0 0
    %312 = vmatpush.bf16.msra.mxu0 0
    %313 = vmatpush.bf16.msra.mxu0 0
    %314 = vmatpush.bf16.msra.mxu0 0
    %315 = vmatpush.bf16.msra.mxu0 0
    %316 = vmatpush.bf16.msra.mxu0 0
    %317 = vmatpush.bf16.msra.mxu0 0
    %318 = vmatpush.bf16.msra.mxu0 %v303
    %319 = vmatmul.bf16.gmra.mxu0 %v309
    %v320 = vpop.f32.mrf.mxu0
    %v321 = vadd.f32 %v306, %v320
    %v322 = vpop.f32.mrf.mxu0
    %v323 = vadd.f32 %v306, %v322
    %324 = vdwg.mxu0
    %v325 = vmax.f32 %v321, 0.0
    %v326 = vmax.f32 %v323, 0.0
    %329 = vrot.lane.b32.xlu0 %v325, 16
    %v330 = vpop.permute.xlu0 %329
    %331 = vrot.lane.b32.xlu0 %v326, 16
    %v332 = vpop.permute.xlu0 %331
    %vm335 = vcmask 195712
    %336 = vst.msk [vmem:[#allocation2] sm:$0xff] %vm335, %v330
    %337 = vst.msk [vmem:[#allocation2 + $0x8] sm:$0xff] %vm335, %v332
    %338 = vset.pattern.permute.xlu0 39
    %339 = vperm.xlu0 %338, %v62
    %v340 = vpop.permute.xlu0 %339
    %342 = vset.pattern.permute.xlu0 39
    %343 = vperm.xlu0 %342, %v64
    %v344 = vpop.permute.xlu0 %343
    %v346 = vperm.slane %v92, 3
    %v347 = vadd.f32 %v340, %v346
    %v348 = vadd.f32 %v344, %v346
    %v349 = vmul.f32 %v347, 0.2
    %v350 = vmul.f32 %v348, 0.2
    %v351 = vmax.f32 %v347, %v349
    %v352 = vmax.f32 %v348, %v350
    %v353 = vadd.f32 %v351, %v41
    %v354 = vadd.f32 %v352, %v42
    %v355 = vsel %vm126, %v353, -inf
    %356 = vmax.xlane.f32.xlu0 %v355
    %v357 = vpop.xlane.xlu0 %356
    %v358 = vsel %vm126, %v354, -inf
    %359 = vmax.xlane.f32.xlu0 %v358
    %v360 = vpop.xlane.xlu0 %359
    %v361 = vsub.f32 %v353, %v357
    %v362 = vsub.f32 %v354, %v360
    %v363 = vmul.f32 %v361, 1.442695
    %v364 = vpow.pop %v363
    %v365 = vmul.f32 %v362, 1.442695
    %v366 = vpow.pop %v365
    %v367 = vsel %vm126, %v364, 0.0
    %368 = vadd.xlane.f32.xlu0 %v367
    %v369 = vpop.xlane.xlu0 %368
    %v370 = vsel %vm126, %v366, 0.0
    %371 = vadd.xlane.f32.xlu0 %v370
    %v372 = vpop.xlane.xlu0 %371
    %v373 = vmax.f32 %v369, 1e-30
    %v374 = vmax.f32 %v372, 1e-30
    %v375 = vrcp.pop %v373
    %v376 = vrcp.pop %v374
    %v377 = vmul.f32 %v364, %v375
    %v378 = vmul.f32 %v366, %v376
    %v379 = vpack.c.bf16 %v378, %v377
    %380 = vrot.lane.b32.xlu0 %v159, 104
    %v381 = vpop.permute.xlu0 %380
    %383 = vrot.lane.b32.xlu0 %v153, 104
    %v384 = vpop.permute.xlu0 %383
    %v387 = vsel %vm126, %v379, 0
    %389 = vmatpush.bf16.msra.mxu0 0
    %390 = vmatpush.bf16.msra.mxu0 0
    %391 = vmatpush.bf16.msra.mxu0 0
    %392 = vmatpush.bf16.msra.mxu0 0
    %393 = vmatpush.bf16.msra.mxu0 0
    %394 = vmatpush.bf16.msra.mxu0 0
    %395 = vmatpush.bf16.msra.mxu0 0
    %396 = vmatpush.bf16.msra.mxu0 %v381
    %397 = vmatmul.bf16.gmra.mxu0 %v387
    %v398 = vpop.f32.mrf.mxu0
    %v399 = vadd.f32 %v384, %v398
    %v400 = vpop.f32.mrf.mxu0
    %v401 = vadd.f32 %v384, %v400
    %402 = vdwg.mxu0
    %v403 = vmax.f32 %v399, 0.0
    %v404 = vmax.f32 %v401, 0.0
    %407 = vrot.lane.b32.xlu0 %v403, 24
    %v408 = vpop.permute.xlu0 %407
    %409 = vrot.lane.b32.xlu0 %v404, 24
    %v410 = vpop.permute.xlu0 %409
    %vm413 = vcmask 261312
    %414 = vst.msk [vmem:[#allocation2] sm:$0xff] %vm413, %v408
    %415 = vst.msk [vmem:[#allocation2 + $0x8] sm:$0xff] %vm413, %v410
    %v416 = vld [vmem:[#allocation2] sm:$0xff]
    %v417 = vld [vmem:[#allocation2 + $0x8] sm:$0xff]
    %v418 = vpack.c.bf16 %v417, %v416
    %v419 = vld [vmem:[%s4] sm:$0xf]
    %v420 = vld [vmem:[%s4 + $0x4] sm:$0xf]
    %v421 = vld [vmem:[%s4 + $0x8] sm:$0xf]
    %v422 = vld [vmem:[%s4 + $0xc] sm:$0xf]
    %v427 = vunpack.c.l.b16 %v419
    %v428 = vunpack.c.l.b16 %v420
    %v429 = vunpack.c.l.b16 %v421
    %v430 = vunpack.c.l.b16 %v422
    %v431 = vpack.c.b16 %v428, %v427
    %v432 = vpack.c.b16 %v430, %v429
    %vm435 = vcmask 261120
    %v437 = vsel %vm435, %v418, 0
    %439 = vmatpush.bf16.msra.mxu0 0
    %440 = vmatpush.bf16.msra.mxu0 0
    %441 = vmatpush.bf16.msra.mxu0 0
    %442 = vmatpush.bf16.msra.mxu0 0
    %443 = vmatpush.bf16.msra.mxu0 0
    %444 = vmatpush.bf16.msra.mxu0 0
    %445 = vmatpush.bf16.msra.mxu0 %v432
    %446 = vmatpush.bf16.msra.mxu0 %v431
    %447 = vmatmul.bf16.gmra.mxu0 %v437
    %v448 = vpop.f32.mrf.mxu0
    %v449 = vadd.f32 0.0, %v448
    %v450 = vpop.f32.mrf.mxu0
    %v451 = vadd.f32 0.0, %v450
    %452 = vdwg.mxu0
    %v453 = vpack.c.bf16 %v449, %v449
    %v454 = vpack.c.bf16 %v451, %v451
    %457 = vrot.lane.b32.xlu0 %v449, 96
    %v458 = vpop.permute.xlu0 %457
    %459 = vrot.lane.b32.xlu0 %v451, 96
    %v460 = vpop.permute.xlu0 %459
    %463 = vxpose.xlu0.b32.start [1/16] %v458, 128
    %464 = vxpose.xlu0.b32.cont [2/16] %v460, 128
    %465 = vxpose.xlu0.b32.cont [3/16] 0.0, 128
    %466 = vxpose.xlu0.b32.cont [4/16] 0.0, 128
    %467 = vxpose.xlu0.b32.cont [5/16] 0.0, 128
    %468 = vxpose.xlu0.b32.cont [6/16] 0.0, 128
    %469 = vxpose.xlu0.b32.cont [7/16] 0.0, 128
    %470 = vxpose.xlu0.b32.cont [8/16] 0.0, 128
    %471 = vxpose.xlu0.b32.cont [9/16] 0.0, 128
    %472 = vxpose.xlu0.b32.cont [10/16] 0.0, 128
    %473 = vxpose.xlu0.b32.cont [11/16] 0.0, 128
    %474 = vxpose.xlu0.b32.cont [12/16] 0.0, 128
    %475 = vxpose.xlu0.b32.cont [13/16] 0.0, 128
    %476 = vxpose.xlu0.b32.cont [14/16] 0.0, 128
    %477 = vxpose.xlu0.b32.cont [15/16] 0.0, 128
    %478 = vxpose.xlu0.b32.end [16/16] 0.0, 128
    %v479 = vpop.trf.xlu0
    %v480 = vpop.trf.xlu0
    %v481 = vpop.trf.xlu0
    %v482 = vpop.trf.xlu0
    %v483 = vpop.trf.xlu0
    %v484 = vpop.trf.xlu0
    %v485 = vpop.trf.xlu0
    %v486 = vpop.trf.xlu0
    %v487 = vpop.trf.xlu0
    %v488 = vpop.trf.xlu0
    %v489 = vpop.trf.xlu0
    %v490 = vpop.trf.xlu0
    %v491 = vpop.trf.xlu0
    %v492 = vpop.trf.xlu0
    %v493 = vpop.trf.xlu0
    %v494 = vpop.trf.xlu0
    %v495 = vld [vmem:[%s5] sm:$0x1]
    %496 = vset.pattern.permute.xlu0 36
    %497 = vperm.xlu0 %496, %v449
    %v498 = vpop.permute.xlu0 %497
    %500 = vset.pattern.permute.xlu0 36
    %501 = vperm.xlu0 %500, %v451
    %v502 = vpop.permute.xlu0 %501
    %v504 = vperm.slane %v479, 0
    %v505 = vadd.f32 %v498, %v504
    %v506 = vadd.f32 %v502, %v504
    %v507 = vmul.f32 %v505, 0.2
    %v508 = vmul.f32 %v506, 0.2
    %v509 = vmax.f32 %v505, %v507
    %v510 = vmax.f32 %v506, %v508
    %v511 = vadd.f32 %v509, %v41
    %v512 = vadd.f32 %v510, %v42
    %v513 = vsel %vm126, %v511, -inf
    %514 = vmax.xlane.f32.xlu0 %v513
    %v515 = vpop.xlane.xlu0 %514
    %v516 = vsel %vm126, %v512, -inf
    %517 = vmax.xlane.f32.xlu0 %v516
    %v518 = vpop.xlane.xlu0 %517
    %v519 = vsub.f32 %v511, %v515
    %v520 = vsub.f32 %v512, %v518
    %v521 = vmul.f32 %v519, 1.442695
    %v522 = vpow.pop %v521
    %v523 = vmul.f32 %v520, 1.442695
    %v524 = vpow.pop %v523
    %v525 = vsel %vm126, %v522, 0.0
    %526 = vadd.xlane.f32.xlu0 %v525
    %v527 = vpop.xlane.xlu0 %526
    %v528 = vsel %vm126, %v524, 0.0
    %529 = vadd.xlane.f32.xlu0 %v528
    %v530 = vpop.xlane.xlu0 %529
    %v531 = vmax.f32 %v527, 1e-30
    %v532 = vmax.f32 %v530, 1e-30
    %v533 = vrcp.pop %v531
    %v534 = vrcp.pop %v532
    %v535 = vmul.f32 %v522, %v533
    %v536 = vmul.f32 %v524, %v534
    %v537 = vpack.c.bf16 %v536, %v535
    %v539 = vperm.slane %v495, 0
    %v543 = vunpack.c.l.b16 %v453
    %v544 = vunpack.c.l.b16 %v454
    %v545 = vpack.c.b16 %v544, %v543
    %v548 = vsel %vm126, %v537, 0
    %550 = vmatpush.bf16.msra.mxu0 0
    %551 = vmatpush.bf16.msra.mxu0 0
    %552 = vmatpush.bf16.msra.mxu0 0
    %553 = vmatpush.bf16.msra.mxu0 0
    %554 = vmatpush.bf16.msra.mxu0 0
    %555 = vmatpush.bf16.msra.mxu0 0
    %556 = vmatpush.bf16.msra.mxu0 0
    %557 = vmatpush.bf16.msra.mxu0 %v545
    %558 = vmatmul.bf16.gmra.mxu0 %v548
    %v559 = vpop.f32.mrf.mxu0
    %v560 = vadd.f32 %v539, %v559
    %v561 = vpop.f32.mrf.mxu0
    %v562 = vadd.f32 %v539, %v561
    %563 = vdwg.mxu0
    %564 = vst.msk [vmem:[#allocation3] sm:$0xff] %vm44, %v560
    %565 = vst.msk [vmem:[#allocation3 + $0x8] sm:$0xff] %vm44, %v562
    %566 = vset.pattern.permute.xlu0 37
    %567 = vperm.xlu0 %566, %v449
    %v568 = vpop.permute.xlu0 %567
    %570 = vset.pattern.permute.xlu0 37
    %571 = vperm.xlu0 %570, %v451
    %v572 = vpop.permute.xlu0 %571
    %v574 = vperm.slane %v479, 1
    %v575 = vadd.f32 %v568, %v574
    %v576 = vadd.f32 %v572, %v574
    %v577 = vmul.f32 %v575, 0.2
    %v578 = vmul.f32 %v576, 0.2
    %v579 = vmax.f32 %v575, %v577
    %v580 = vmax.f32 %v576, %v578
    %v581 = vadd.f32 %v579, %v41
    %v582 = vadd.f32 %v580, %v42
    %v583 = vsel %vm126, %v581, -inf
    %584 = vmax.xlane.f32.xlu0 %v583
    %v585 = vpop.xlane.xlu0 %584
    %v586 = vsel %vm126, %v582, -inf
    %587 = vmax.xlane.f32.xlu0 %v586
    %v588 = vpop.xlane.xlu0 %587
    %v589 = vsub.f32 %v581, %v585
    %v590 = vsub.f32 %v582, %v588
    %v591 = vmul.f32 %v589, 1.442695
    %v592 = vpow.pop %v591
    %v593 = vmul.f32 %v590, 1.442695
    %v594 = vpow.pop %v593
    %v595 = vsel %vm126, %v592, 0.0
    %596 = vadd.xlane.f32.xlu0 %v595
    %v597 = vpop.xlane.xlu0 %596
    %v598 = vsel %vm126, %v594, 0.0
    %599 = vadd.xlane.f32.xlu0 %v598
    %v600 = vpop.xlane.xlu0 %599
    %v601 = vmax.f32 %v597, 1e-30
    %v602 = vmax.f32 %v600, 1e-30
    %v603 = vrcp.pop %v601
    %v604 = vrcp.pop %v602
    %v605 = vmul.f32 %v592, %v603
    %v606 = vmul.f32 %v594, %v604
    %v607 = vpack.c.bf16 %v606, %v605
    %608 = vrot.lane.b32.xlu0 %v545, 120
    %v609 = vpop.permute.xlu0 %608
    %611 = vrot.lane.b32.xlu0 %v539, 120
    %v612 = vpop.permute.xlu0 %611
    %v615 = vsel %vm126, %v607, 0
    %617 = vmatpush.bf16.msra.mxu0 0
    %618 = vmatpush.bf16.msra.mxu0 0
    %619 = vmatpush.bf16.msra.mxu0 0
    %620 = vmatpush.bf16.msra.mxu0 0
    %621 = vmatpush.bf16.msra.mxu0 0
    %622 = vmatpush.bf16.msra.mxu0 0
    %623 = vmatpush.bf16.msra.mxu0 0
    %624 = vmatpush.bf16.msra.mxu0 %v609
    %625 = vmatmul.bf16.gmra.mxu0 %v615
    %v626 = vpop.f32.mrf.mxu0
    %v627 = vadd.f32 %v612, %v626
    %v628 = vpop.f32.mrf.mxu0
    %v629 = vadd.f32 %v612, %v628
    %630 = vdwg.mxu0
    %633 = vrot.lane.b32.xlu0 %v627, 8
    %v634 = vpop.permute.xlu0 %633
    %635 = vrot.lane.b32.xlu0 %v629, 8
    %v636 = vpop.permute.xlu0 %635
    %639 = vst.msk [vmem:[#allocation3] sm:$0xff] %vm257, %v634
    %640 = vst.msk [vmem:[#allocation3 + $0x8] sm:$0xff] %vm257, %v636
    %641 = vset.pattern.permute.xlu0 38
    %642 = vperm.xlu0 %641, %v449
    %v643 = vpop.permute.xlu0 %642
    %645 = vset.pattern.permute.xlu0 38
    %646 = vperm.xlu0 %645, %v451
    %v647 = vpop.permute.xlu0 %646
    %v649 = vperm.slane %v479, 2
    %v650 = vadd.f32 %v643, %v649
    %v651 = vadd.f32 %v647, %v649
    %v652 = vmul.f32 %v650, 0.2
    %v653 = vmul.f32 %v651, 0.2
    %v654 = vmax.f32 %v650, %v652
    %v655 = vmax.f32 %v651, %v653
    %v656 = vadd.f32 %v654, %v41
    %v657 = vadd.f32 %v655, %v42
    %v658 = vsel %vm126, %v656, -inf
    %659 = vmax.xlane.f32.xlu0 %v658
    %v660 = vpop.xlane.xlu0 %659
    %v661 = vsel %vm126, %v657, -inf
    %662 = vmax.xlane.f32.xlu0 %v661
    %v663 = vpop.xlane.xlu0 %662
    %v664 = vsub.f32 %v656, %v660
    %v665 = vsub.f32 %v657, %v663
    %v666 = vmul.f32 %v664, 1.442695
    %v667 = vpow.pop %v666
    %v668 = vmul.f32 %v665, 1.442695
    %v669 = vpow.pop %v668
    %v670 = vsel %vm126, %v667, 0.0
    %671 = vadd.xlane.f32.xlu0 %v670
    %v672 = vpop.xlane.xlu0 %671
    %v673 = vsel %vm126, %v669, 0.0
    %674 = vadd.xlane.f32.xlu0 %v673
    %v675 = vpop.xlane.xlu0 %674
    %v676 = vmax.f32 %v672, 1e-30
    %v677 = vmax.f32 %v675, 1e-30
    %v678 = vrcp.pop %v676
    %v679 = vrcp.pop %v677
    %v680 = vmul.f32 %v667, %v678
    %v681 = vmul.f32 %v669, %v679
    %v682 = vpack.c.bf16 %v681, %v680
    %683 = vrot.lane.b32.xlu0 %v545, 112
    %v684 = vpop.permute.xlu0 %683
    %686 = vrot.lane.b32.xlu0 %v539, 112
    %v687 = vpop.permute.xlu0 %686
    %v690 = vsel %vm126, %v682, 0
    %692 = vmatpush.bf16.msra.mxu0 0
    %693 = vmatpush.bf16.msra.mxu0 0
    %694 = vmatpush.bf16.msra.mxu0 0
    %695 = vmatpush.bf16.msra.mxu0 0
    %696 = vmatpush.bf16.msra.mxu0 0
    %697 = vmatpush.bf16.msra.mxu0 0
    %698 = vmatpush.bf16.msra.mxu0 0
    %699 = vmatpush.bf16.msra.mxu0 %v684
    %700 = vmatmul.bf16.gmra.mxu0 %v690
    %v701 = vpop.f32.mrf.mxu0
    %v702 = vadd.f32 %v687, %v701
    %v703 = vpop.f32.mrf.mxu0
    %v704 = vadd.f32 %v687, %v703
    %705 = vdwg.mxu0
    %708 = vrot.lane.b32.xlu0 %v702, 16
    %v709 = vpop.permute.xlu0 %708
    %710 = vrot.lane.b32.xlu0 %v704, 16
    %v711 = vpop.permute.xlu0 %710
    %714 = vst.msk [vmem:[#allocation3] sm:$0xff] %vm335, %v709
    %715 = vst.msk [vmem:[#allocation3 + $0x8] sm:$0xff] %vm335, %v711
    %716 = vset.pattern.permute.xlu0 39
    %717 = vperm.xlu0 %716, %v449
    %v718 = vpop.permute.xlu0 %717
    %720 = vset.pattern.permute.xlu0 39
    %721 = vperm.xlu0 %720, %v451
    %v722 = vpop.permute.xlu0 %721
    %v724 = vperm.slane %v479, 3
    %v725 = vadd.f32 %v718, %v724
    %v726 = vadd.f32 %v722, %v724
    %v727 = vmul.f32 %v725, 0.2
    %v728 = vmul.f32 %v726, 0.2
    %v729 = vmax.f32 %v725, %v727
    %v730 = vmax.f32 %v726, %v728
    %v731 = vadd.f32 %v729, %v41
    %v732 = vadd.f32 %v730, %v42
    %v733 = vsel %vm126, %v731, -inf
    %734 = vmax.xlane.f32.xlu0 %v733
    %v735 = vpop.xlane.xlu0 %734
    %v736 = vsel %vm126, %v732, -inf
    %737 = vmax.xlane.f32.xlu0 %v736
    %v738 = vpop.xlane.xlu0 %737
    %v739 = vsub.f32 %v731, %v735
    %v740 = vsub.f32 %v732, %v738
    %v741 = vmul.f32 %v739, 1.442695
    %v742 = vpow.pop %v741
    %v743 = vmul.f32 %v740, 1.442695
    %v744 = vpow.pop %v743
    %v745 = vsel %vm126, %v742, 0.0
    %746 = vadd.xlane.f32.xlu0 %v745
    %v747 = vpop.xlane.xlu0 %746
    %v748 = vsel %vm126, %v744, 0.0
    %749 = vadd.xlane.f32.xlu0 %v748
    %v750 = vpop.xlane.xlu0 %749
    %v751 = vmax.f32 %v747, 1e-30
    %v752 = vmax.f32 %v750, 1e-30
    %v753 = vrcp.pop %v751
    %v754 = vrcp.pop %v752
    %v755 = vmul.f32 %v742, %v753
    %v756 = vmul.f32 %v744, %v754
    %v757 = vpack.c.bf16 %v756, %v755
    %758 = vrot.lane.b32.xlu0 %v545, 104
    %v759 = vpop.permute.xlu0 %758
    %761 = vrot.lane.b32.xlu0 %v539, 104
    %v762 = vpop.permute.xlu0 %761
    %v765 = vsel %vm126, %v757, 0
    %767 = vmatpush.bf16.msra.mxu0 0
    %768 = vmatpush.bf16.msra.mxu0 0
    %769 = vmatpush.bf16.msra.mxu0 0
    %770 = vmatpush.bf16.msra.mxu0 0
    %771 = vmatpush.bf16.msra.mxu0 0
    %772 = vmatpush.bf16.msra.mxu0 0
    %773 = vmatpush.bf16.msra.mxu0 0
    %774 = vmatpush.bf16.msra.mxu0 %v759
    %775 = vmatmul.bf16.gmra.mxu0 %v765
    %v776 = vpop.f32.mrf.mxu0
    %v777 = vadd.f32 %v762, %v776
    %v778 = vpop.f32.mrf.mxu0
    %v779 = vadd.f32 %v762, %v778
    %780 = vdwg.mxu0
    %783 = vrot.lane.b32.xlu0 %v777, 24
    %v784 = vpop.permute.xlu0 %783
    %785 = vrot.lane.b32.xlu0 %v779, 24
    %v786 = vpop.permute.xlu0 %785
    %789 = vst.msk [vmem:[#allocation3] sm:$0xff] %vm413, %v784
    %790 = vst.msk [vmem:[#allocation3 + $0x8] sm:$0xff] %vm413, %v786
    %v791 = vld [vmem:[#allocation3] sm:$0xff]
    %v792 = vld [vmem:[#allocation3 + $0x8] sm:$0xff]
    %v793 = vld [vmem:[%s6] sm:$0x1]
    %v794 = vpack.c.bf16 %v792, %v791
    %v796 = vsel %vm126, %v793, 0
    %798 = vmatpush.bf16.msra.mxu0 0
    %799 = vmatpush.bf16.msra.mxu0 0
    %800 = vmatpush.bf16.msra.mxu0 0
    %801 = vmatpush.bf16.msra.mxu0 0
    %802 = vmatpush.bf16.msra.mxu0 0
    %803 = vmatpush.bf16.msra.mxu0 0
    %804 = vmatpush.bf16.msra.mxu0 0
    %805 = vmatpush.bf16.msra.mxu0 %v794
    %806 = vmatmul.bf16.gmra.mxu0 %v796
    %v807 = vpop.f32.mrf.mxu0
    %v808 = vadd.f32 0.0, %v807
    %v809 = vpop.f32.mrf.mxu0
    %810 = vdwg.mxu0
    %v811 = vpack.c.bf16 %v808, %v808
    %v812 = vld [vmem:[%s7] sm:$0xf]
    %v813 = vld [vmem:[%s7 + $0x4] sm:$0xf]
    %v814 = vld [vmem:[%s7 + $0x8] sm:$0xf]
    %v815 = vld [vmem:[%s7 + $0xc] sm:$0xf]
    %v816 = vld [vmem:[%s8] sm:$0x1]
    %v818 = vperm.slane %v816, 0
    %v824 = vunpack.c.l.b16 %v812
    %v825 = vunpack.c.l.b16 %v813
    %v826 = vunpack.c.l.b16 %v814
    %v827 = vunpack.c.l.b16 %v815
    %v828 = vpack.c.b16 %v825, %v824
    %v829 = vpack.c.b16 %v827, %v826
    %v833 = vsel %vm435, %v811, 0
    %835 = vmatpush.bf16.msra.mxu0 0
    %836 = vmatpush.bf16.msra.mxu0 0
    %837 = vmatpush.bf16.msra.mxu0 0
    %838 = vmatpush.bf16.msra.mxu0 0
    %839 = vmatpush.bf16.msra.mxu0 0
    %840 = vmatpush.bf16.msra.mxu0 0
    %841 = vmatpush.bf16.msra.mxu0 %v829
    %842 = vmatpush.bf16.msra.mxu0 %v828
    %843 = vmatmul.bf16.gmra.mxu0 %v833
    %v844 = vpop.f32.mrf.mxu0
    %v845 = vadd.f32 %v818, %v844
    %v846 = vpop.f32.mrf.mxu0
    %847 = vdwg.mxu0
    %848 = vst [vmem:[#allocation4] sm:$0x3] %v845
    // Predicated region
    $region38: #{gat_forward.1} parent=1 // pred_check
      _
    $region39: #{gat_forward.1} parent=1 // pred_check_branch
      %850 = sbr.rel (0) target = $region41
    $region40: #{gat_forward.1} parent=1 // pred_region
      %852 = vsyncadd [#allocation5], 0
      %s854 = sshll.u32 [#allocation4], 4
      %s855 = int_to_ptr.vmem [resolvable:$true] %s854
      %s856 = sshll.u32 %s9, 4
      %s857 = int_to_ptr.hbm [resolvable:$true] %s856
      %859 = dma.vmem_to_hbm [thread:$0]  %s855, 32, %s857, [#allocation5]
    $region41: #{gat_forward.1} parent=1 // pred_fallthru
      _
    // Predicated region
    $region42: #{gat_forward.1} parent=1 // pred_check
      _
    $region43: #{gat_forward.1} parent=1 // pred_check_branch
      %861 = sbr.rel (0) target = $region45
    $region44: #{gat_forward.1} parent=1 // pred_region
      %863 = dma.done [#allocation5], 32
    $region45: #{gat_forward.1} parent=1 // pred_fallthru
      _
    %864 = vsyncpa [#allocation5], 1

</llo_original>
